<compile_context>
chip_gen: v6e
topology: v6e:2x2x1
jax: 0.10.0
libtpu: 0.0.40
codegen_flags: <defaults>
</compile_context>

<pallas_src>
import functools

import jax
import jax.numpy as jnp
from jax.experimental import pallas as pl
from jax.experimental.pallas import tpu as pltpu


def _resblock_kernel(x_ref, w1_ref, b1_ref, w2_ref, b2_ref, col_ref, o_ref, *,
                     H, W, matmul_dtype):
    # x_ref  : (1, Cp, H*W)   un-padded activation, one image, channels-first flat
    # w*_ref : (Cp, 9*Cp)     conv weights; column = (kh*3 + kw)*Cp + c_in
    # b*_ref : (Cp, 1)        biases
    # col_ref: (1, H*W)       int32 w-coordinate of each flattened position
    # o_ref  : (1, Cp, H*W)   output (stored axis H*W lane-dense)
    Cp = x_ref.shape[1]
    HW = H * W

    x = x_ref[0].astype(jnp.float32)                      # (Cp, HW)

    # Horizontal-wrap masks for the flat shifts (vertical OOB is handled by the
    # zero fill below).  Hoisted once, shared by both convs.
    col = col_ref[...]                                    # (1, HW)
    ok_left = col >= 1                                    # valid for dw == -1
    ok_right = col <= W - 2                               # valid for dw == +1

    def im2col(a):
        """(Cp, HW) -> (9*Cp, HW) patch matrix, rows = [tap (kh,kw) major, cin minor]."""
        # W+1 zero columns on each side so every tap is a plain static lane slice
        # (also provides the zero fill for the vertical halo).
        zpad = jnp.zeros((Cp, W + 1), jnp.float32)
        ae = jnp.concatenate([zpad, a, zpad], axis=1)     # (Cp, HW + 2W + 2)
        slabs = []
        for dh in (-1, 0, 1):
            for dw in (-1, 0, 1):
                s = dh * W + dw                           # flat shift of this tap
                shifted = ae[:, W + 1 + s: W + 1 + s + HW]
                if dw == -1:
                    shifted = jnp.where(ok_left, shifted, 0.0)
                elif dw == 1:
                    shifted = jnp.where(ok_right, shifted, 0.0)
                slabs.append(shifted)
        # Cp is a multiple of 8, so this sublane stack needs no relayout.
        return jnp.concatenate(slabs, axis=0)             # (9*Cp, HW)

    # conv1 (3x3, SAME) + bias + ReLU: one K=9*Cp matmul, f32 accumulation.
    h1 = jnp.dot(w1_ref[...].astype(matmul_dtype),
                 im2col(x).astype(matmul_dtype),
                 preferred_element_type=jnp.float32)
    h1 = jnp.maximum(h1 + b1_ref[...], 0.0)               # (Cp, HW) f32

    # conv2 (3x3, SAME) + bias + residual.
    out = jnp.dot(w2_ref[...].astype(matmul_dtype),
                  im2col(h1).astype(matmul_dtype),
                  preferred_element_type=jnp.float32)
    out = out + b2_ref[...] + x
    o_ref[0] = out.astype(o_ref.dtype)


def residual_block_forward(x_nchw, w1_hwio, b1, w2_hwio, b2, *,
                           matmul_dtype=jnp.float32):
    """Pallas forward.  x_nchw: (N, C, H, W) f32; returns (N, C, H, W) f32.

    Pass matmul_dtype=jnp.bfloat16 on v6e/v7x to run the MXU in bf16 (f32 accum).
    """
    N, C, H, W = x_nchw.shape
    HW = H * W
    Cp = max(8, ((C + 7) // 8) * 8)                       # 8-aligned channel count

    # Free contiguous reshape only -- no transpose, no host-side spatial pad.
    x = x_nchw.reshape(N, C, HW).astype(jnp.float32)
    if Cp != C:
        x = jnp.pad(x, ((0, 0), (0, Cp - C), (0, 0)))     # zero channels

    def prep_w(w_hwio):
        # HWIO (3,3,Cin,Cout) -> (Cout, kh, kw, Cin), zero-pad channels, then
        # flatten to (Cp, 9*Cp) with column = (kh*3 + kw)*Cp + cin (matches im2col).
        w = jnp.transpose(w_hwio, (3, 0, 1, 2)).astype(jnp.float32)
        w = jnp.pad(w, ((0, Cp - C), (0, 0), (0, 0), (0, Cp - C)))
        return w.reshape(Cp, 9 * Cp)

    def prep_b(b):
        return jnp.pad(b.astype(jnp.float32), (0, Cp - C)).reshape(Cp, 1)

    w1m, w2m = prep_w(w1_hwio), prep_w(w2_hwio)
    b1r, b2r = prep_b(b1), prep_b(b2)
    col = (jnp.arange(HW, dtype=jnp.int32) % W).reshape(1, HW)

    kernel = functools.partial(_resblock_kernel, H=H, W=W,
                               matmul_dtype=matmul_dtype)
    out = pl.pallas_call(
        kernel,
        out_shape=jax.ShapeDtypeStruct((N, Cp, HW), jnp.float32),
        grid_spec=pltpu.PrefetchScalarGridSpec(
            num_scalar_prefetch=0,
            grid=(N,),
            in_specs=[
                pl.BlockSpec((1, Cp, HW), lambda n: (n, 0, 0)),
                pl.BlockSpec((Cp, 9 * Cp), lambda n: (0, 0)),
                pl.BlockSpec((Cp, 1), lambda n: (0, 0)),
                pl.BlockSpec((Cp, 9 * Cp), lambda n: (0, 0)),
                pl.BlockSpec((Cp, 1), lambda n: (0, 0)),
                pl.BlockSpec((1, HW), lambda n: (0, 0)),
            ],
            out_specs=pl.BlockSpec((1, Cp, HW), lambda n: (n, 0, 0)),
        ),
        compiler_params=pltpu.CompilerParams(
            dimension_semantics=("parallel",)),
    )(x, w1m, b1r, w2m, b2r, col)
    return out[:, :C, :].reshape(N, C, H, W)


def _ref_forward(x_nchw, w1_hwio, b1, w2_hwio, b2):
    """Pure-JAX reference (XLA convs), identical semantics to the PyTorch module."""
    dn = jax.lax.conv_dimension_numbers(x_nchw.shape, w1_hwio.shape,
                                        ("NCHW", "HWIO", "NCHW"))
    h = jax.lax.conv_general_dilated(x_nchw, w1_hwio, (1, 1), "SAME",
                                     dimension_numbers=dn)
    h = jnp.maximum(h + b1.reshape(1, -1, 1, 1), 0.0)
    o = jax.lax.conv_general_dilated(h, w2_hwio, (1, 1), "SAME",
                                     dimension_numbers=dn)
    return o + b2.reshape(1, -1, 1, 1) + x_nchw


if __name__ == "__main__":
    key = jax.random.PRNGKey(0)
    k_x, k_w1, k_b1, k_w2, k_b2 = jax.random.split(key, 5)

    N, C, H, W = 2, 4, 16, 16
    x = jax.random.normal(k_x, (N, C, H, W), jnp.float32)

    # Deterministic synthetic parameters (HWIO), scaled like PyTorch Conv2d init.
    fan_in = C * 3 * 3
    scale = 1.0 / jnp.sqrt(jnp.float32(fan_in))
    w1 = jax.random.uniform(k_w1, (3, 3, C, C), jnp.float32, -scale, scale)
    b1 = jax.random.uniform(k_b1, (C,), jnp.float32, -scale, scale)
    w2 = jax.random.uniform(k_w2, (3, 3, C, C), jnp.float32, -scale, scale)
    b2 = jax.random.uniform(k_b2, (C,), jnp.float32, -scale, scale)

    ref = _ref_forward(x, w1, b1, w2, b2)

    # f32 matmul path (exact check).
    out = jax.block_until_ready(residual_block_forward(x, w1, b1, w2, b2))
    assert out.shape == (N, C, H, W)
    assert jnp.allclose(out, ref, rtol=1e-4, atol=1e-4), "f32 mismatch vs reference"

    # bf16-operand MXU path (v6e/v7x recommendation); f32 accumulation, looser tol.
    out_bf16 = jax.block_until_ready(
        residual_block_forward(x, w1, b1, w2, b2, matmul_dtype=jnp.bfloat16))
    assert jnp.allclose(out_bf16, ref, rtol=5e-2, atol=5e-2), "bf16 mismatch"

    print("KERNEL_OK")
</pallas_src>

<mosaic_0001>
module attributes {stable_mosaic.version = 11 : i64} {
  func.func @_resblock_kernel(%arg0: i32, %arg1: memref<1x8x256xf32, #tpu.memory_space<vmem>>, %arg2: memref<8x72xf32, #tpu.memory_space<vmem>>, %arg3: memref<8x1xf32, #tpu.memory_space<vmem>>, %arg4: memref<8x72xf32, #tpu.memory_space<vmem>>, %arg5: memref<8x1xf32, #tpu.memory_space<vmem>>, %arg6: memref<1x256xi32, #tpu.memory_space<vmem>>, %arg7: memref<1x8x256xf32, #tpu.memory_space<vmem>>) attributes {dimension_semantics = [#tpu.dimension_semantics<parallel>], iteration_bounds = array<i64: 2>, scalar_prefetch = 0 : i64, scratch_operands = 0 : i64, tpu.core_type = #tpu.core_type<tc>, window_params = [{transform_indices = @transform_0, window_bounds = array<i64: 1, 8, 256>}, {pipeline_mode = #tpu.pipeline_mode<synchronous>, transform_indices = @transform_1, window_bounds = array<i64: 8, 72>}, {pipeline_mode = #tpu.pipeline_mode<synchronous>, transform_indices = @transform_2, window_bounds = array<i64: 8, 1>}, {pipeline_mode = #tpu.pipeline_mode<synchronous>, transform_indices = @transform_3, window_bounds = array<i64: 8, 72>}, {pipeline_mode = #tpu.pipeline_mode<synchronous>, transform_indices = @transform_4, window_bounds = array<i64: 8, 1>}, {pipeline_mode = #tpu.pipeline_mode<synchronous>, transform_indices = @transform_5, window_bounds = array<i64: 1, 256>}, {transform_indices = @transform_6, window_bounds = array<i64: 1, 8, 256>}]} {
    %c0 = arith.constant 0 : index
    %c0_0 = arith.constant 0 : index
    %c0_1 = arith.constant 0 : index
    %0 = vector.load %arg1[%c0, %c0_0, %c0_1] : memref<1x8x256xf32, #tpu.memory_space<vmem>>, vector<1x8x256xf32>
    %1 = vector.shape_cast %0 : vector<1x8x256xf32> to vector<8x256xf32>
    %c0_2 = arith.constant 0 : index
    %c0_3 = arith.constant 0 : index
    %2 = vector.load %arg6[%c0_2, %c0_3] : memref<1x256xi32, #tpu.memory_space<vmem>>, vector<1x256xi32>
    %c1_i32 = arith.constant 1 : i32
    %3 = vector.broadcast %c1_i32 : i32 to vector<1x256xi32>
    %4 = arith.cmpi sge, %2, %3 : vector<1x256xi32>
    %c14_i32 = arith.constant 14 : i32
    %5 = vector.broadcast %c14_i32 : i32 to vector<1x256xi32>
    %6 = arith.cmpi sle, %2, %5 : vector<1x256xi32>
    %c0_4 = arith.constant 0 : index
    %c0_5 = arith.constant 0 : index
    %7 = vector.load %arg2[%c0_4, %c0_5] : memref<8x72xf32, #tpu.memory_space<vmem>>, vector<8x72xf32>
    %cst = arith.constant 0.000000e+00 : f32
    %8 = vector.broadcast %cst : f32 to vector<8x17xf32>
    %9 = tpu.concatenate %8, %1, %8 in 1 : vector<8x17xf32>, vector<8x256xf32>, vector<8x17xf32> -> vector<8x290xf32>
    %10 = vector.extract_strided_slice %9 {offsets = [0, 0], sizes = [8, 256], strides = [1, 1]} : vector<8x290xf32> to vector<8x256xf32>
    %cst_6 = arith.constant 0.000000e+00 : f32
    %11 = vector.shape_cast %4 : vector<1x256xi1> to vector<1x256xi1>
    %12 = vector.broadcast %11 : vector<1x256xi1> to vector<8x256xi1>
    %13 = vector.broadcast %cst_6 : f32 to vector<8x256xf32>
    %14 = arith.select %12, %10, %13 : vector<8x256xi1>, vector<8x256xf32>
    %15 = vector.extract_strided_slice %9 {offsets = [0, 1], sizes = [8, 256], strides = [1, 1]} : vector<8x290xf32> to vector<8x256xf32>
    %16 = vector.extract_strided_slice %9 {offsets = [0, 2], sizes = [8, 256], strides = [1, 1]} : vector<8x290xf32> to vector<8x256xf32>
    %cst_7 = arith.constant 0.000000e+00 : f32
    %17 = vector.shape_cast %6 : vector<1x256xi1> to vector<1x256xi1>
    %18 = vector.broadcast %17 : vector<1x256xi1> to vector<8x256xi1>
    %19 = vector.broadcast %cst_7 : f32 to vector<8x256xf32>
    %20 = arith.select %18, %16, %19 : vector<8x256xi1>, vector<8x256xf32>
    %21 = vector.extract_strided_slice %9 {offsets = [0, 16], sizes = [8, 256], strides = [1, 1]} : vector<8x290xf32> to vector<8x256xf32>
    %cst_8 = arith.constant 0.000000e+00 : f32
    %22 = vector.shape_cast %4 : vector<1x256xi1> to vector<1x256xi1>
    %23 = vector.broadcast %22 : vector<1x256xi1> to vector<8x256xi1>
    %24 = vector.broadcast %cst_8 : f32 to vector<8x256xf32>
    %25 = arith.select %23, %21, %24 : vector<8x256xi1>, vector<8x256xf32>
    %26 = vector.extract_strided_slice %9 {offsets = [0, 17], sizes = [8, 256], strides = [1, 1]} : vector<8x290xf32> to vector<8x256xf32>
    %27 = vector.extract_strided_slice %9 {offsets = [0, 18], sizes = [8, 256], strides = [1, 1]} : vector<8x290xf32> to vector<8x256xf32>
    %cst_9 = arith.constant 0.000000e+00 : f32
    %28 = vector.shape_cast %6 : vector<1x256xi1> to vector<1x256xi1>
    %29 = vector.broadcast %28 : vector<1x256xi1> to vector<8x256xi1>
    %30 = vector.broadcast %cst_9 : f32 to vector<8x256xf32>
    %31 = arith.select %29, %27, %30 : vector<8x256xi1>, vector<8x256xf32>
    %32 = vector.extract_strided_slice %9 {offsets = [0, 32], sizes = [8, 256], strides = [1, 1]} : vector<8x290xf32> to vector<8x256xf32>
    %cst_10 = arith.constant 0.000000e+00 : f32
    %33 = vector.shape_cast %4 : vector<1x256xi1> to vector<1x256xi1>
    %34 = vector.broadcast %33 : vector<1x256xi1> to vector<8x256xi1>
    %35 = vector.broadcast %cst_10 : f32 to vector<8x256xf32>
    %36 = arith.select %34, %32, %35 : vector<8x256xi1>, vector<8x256xf32>
    %37 = vector.extract_strided_slice %9 {offsets = [0, 33], sizes = [8, 256], strides = [1, 1]} : vector<8x290xf32> to vector<8x256xf32>
    %38 = vector.extract_strided_slice %9 {offsets = [0, 34], sizes = [8, 256], strides = [1, 1]} : vector<8x290xf32> to vector<8x256xf32>
    %cst_11 = arith.constant 0.000000e+00 : f32
    %39 = vector.shape_cast %6 : vector<1x256xi1> to vector<1x256xi1>
    %40 = vector.broadcast %39 : vector<1x256xi1> to vector<8x256xi1>
    %41 = vector.broadcast %cst_11 : f32 to vector<8x256xf32>
    %42 = arith.select %40, %38, %41 : vector<8x256xi1>, vector<8x256xf32>
    %43 = tpu.concatenate %14, %15, %20, %25, %26, %31, %36, %37, %42 in 0 : vector<8x256xf32>, vector<8x256xf32>, vector<8x256xf32>, vector<8x256xf32>, vector<8x256xf32>, vector<8x256xf32>, vector<8x256xf32>, vector<8x256xf32>, vector<8x256xf32> -> vector<72x256xf32>
    %cst_12 = arith.constant dense<0.000000e+00> : vector<8x256xf32>
    %44 = tpu.matmul %7, %43, %cst_12 {dimension_numbers = #tpu.dot_dimension_numbers<[1], [0], [0], [1], [0, 0, 1, 1], [], []>} : vector<8x72xf32>, vector<72x256xf32>, vector<8x256xf32> -> vector<8x256xf32>
    %c0_13 = arith.constant 0 : index
    %c0_14 = arith.constant 0 : index
    %45 = vector.load %arg3[%c0_13, %c0_14] : memref<8x1xf32, #tpu.memory_space<vmem>>, vector<8x1xf32>
    %46 = vector.broadcast %45 : vector<8x1xf32> to vector<8x256xf32>
    %47 = arith.addf %44, %46 : vector<8x256xf32>
    %cst_15 = arith.constant 0.000000e+00 : f32
    %48 = vector.broadcast %cst_15 : f32 to vector<8x256xf32>
    %49 = arith.maximumf %47, %48 : vector<8x256xf32>
    %c0_16 = arith.constant 0 : index
    %c0_17 = arith.constant 0 : index
    %50 = vector.load %arg4[%c0_16, %c0_17] : memref<8x72xf32, #tpu.memory_space<vmem>>, vector<8x72xf32>
    %cst_18 = arith.constant 0.000000e+00 : f32
    %51 = vector.broadcast %cst_18 : f32 to vector<8x17xf32>
    %52 = tpu.concatenate %51, %49, %51 in 1 : vector<8x17xf32>, vector<8x256xf32>, vector<8x17xf32> -> vector<8x290xf32>
    %53 = vector.extract_strided_slice %52 {offsets = [0, 0], sizes = [8, 256], strides = [1, 1]} : vector<8x290xf32> to vector<8x256xf32>
    %cst_19 = arith.constant 0.000000e+00 : f32
    %54 = vector.shape_cast %4 : vector<1x256xi1> to vector<1x256xi1>
    %55 = vector.broadcast %54 : vector<1x256xi1> to vector<8x256xi1>
    %56 = vector.broadcast %cst_19 : f32 to vector<8x256xf32>
    %57 = arith.select %55, %53, %56 : vector<8x256xi1>, vector<8x256xf32>
    %58 = vector.extract_strided_slice %52 {offsets = [0, 1], sizes = [8, 256], strides = [1, 1]} : vector<8x290xf32> to vector<8x256xf32>
    %59 = vector.extract_strided_slice %52 {offsets = [0, 2], sizes = [8, 256], strides = [1, 1]} : vector<8x290xf32> to vector<8x256xf32>
    %cst_20 = arith.constant 0.000000e+00 : f32
    %60 = vector.shape_cast %6 : vector<1x256xi1> to vector<1x256xi1>
    %61 = vector.broadcast %60 : vector<1x256xi1> to vector<8x256xi1>
    %62 = vector.broadcast %cst_20 : f32 to vector<8x256xf32>
    %63 = arith.select %61, %59, %62 : vector<8x256xi1>, vector<8x256xf32>
    %64 = vector.extract_strided_slice %52 {offsets = [0, 16], sizes = [8, 256], strides = [1, 1]} : vector<8x290xf32> to vector<8x256xf32>
    %cst_21 = arith.constant 0.000000e+00 : f32
    %65 = vector.shape_cast %4 : vector<1x256xi1> to vector<1x256xi1>
    %66 = vector.broadcast %65 : vector<1x256xi1> to vector<8x256xi1>
    %67 = vector.broadcast %cst_21 : f32 to vector<8x256xf32>
    %68 = arith.select %66, %64, %67 : vector<8x256xi1>, vector<8x256xf32>
    %69 = vector.extract_strided_slice %52 {offsets = [0, 17], sizes = [8, 256], strides = [1, 1]} : vector<8x290xf32> to vector<8x256xf32>
    %70 = vector.extract_strided_slice %52 {offsets = [0, 18], sizes = [8, 256], strides = [1, 1]} : vector<8x290xf32> to vector<8x256xf32>
    %cst_22 = arith.constant 0.000000e+00 : f32
    %71 = vector.shape_cast %6 : vector<1x256xi1> to vector<1x256xi1>
    %72 = vector.broadcast %71 : vector<1x256xi1> to vector<8x256xi1>
    %73 = vector.broadcast %cst_22 : f32 to vector<8x256xf32>
    %74 = arith.select %72, %70, %73 : vector<8x256xi1>, vector<8x256xf32>
    %75 = vector.extract_strided_slice %52 {offsets = [0, 32], sizes = [8, 256], strides = [1, 1]} : vector<8x290xf32> to vector<8x256xf32>
    %cst_23 = arith.constant 0.000000e+00 : f32
    %76 = vector.shape_cast %4 : vector<1x256xi1> to vector<1x256xi1>
    %77 = vector.broadcast %76 : vector<1x256xi1> to vector<8x256xi1>
    %78 = vector.broadcast %cst_23 : f32 to vector<8x256xf32>
    %79 = arith.select %77, %75, %78 : vector<8x256xi1>, vector<8x256xf32>
    %80 = vector.extract_strided_slice %52 {offsets = [0, 33], sizes = [8, 256], strides = [1, 1]} : vector<8x290xf32> to vector<8x256xf32>
    %81 = vector.extract_strided_slice %52 {offsets = [0, 34], sizes = [8, 256], strides = [1, 1]} : vector<8x290xf32> to vector<8x256xf32>
    %cst_24 = arith.constant 0.000000e+00 : f32
    %82 = vector.shape_cast %6 : vector<1x256xi1> to vector<1x256xi1>
    %83 = vector.broadcast %82 : vector<1x256xi1> to vector<8x256xi1>
    %84 = vector.broadcast %cst_24 : f32 to vector<8x256xf32>
    %85 = arith.select %83, %81, %84 : vector<8x256xi1>, vector<8x256xf32>
    %86 = tpu.concatenate %57, %58, %63, %68, %69, %74, %79, %80, %85 in 0 : vector<8x256xf32>, vector<8x256xf32>, vector<8x256xf32>, vector<8x256xf32>, vector<8x256xf32>, vector<8x256xf32>, vector<8x256xf32>, vector<8x256xf32>, vector<8x256xf32> -> vector<72x256xf32>
    %cst_25 = arith.constant dense<0.000000e+00> : vector<8x256xf32>
    %87 = tpu.matmul %50, %86, %cst_25 {dimension_numbers = #tpu.dot_dimension_numbers<[1], [0], [0], [1], [0, 0, 1, 1], [], []>} : vector<8x72xf32>, vector<72x256xf32>, vector<8x256xf32> -> vector<8x256xf32>
    %c0_26 = arith.constant 0 : index
    %c0_27 = arith.constant 0 : index
    %88 = vector.load %arg5[%c0_26, %c0_27] : memref<8x1xf32, #tpu.memory_space<vmem>>, vector<8x1xf32>
    %89 = vector.broadcast %88 : vector<8x1xf32> to vector<8x256xf32>
    %90 = arith.addf %87, %89 : vector<8x256xf32>
    %91 = arith.addf %90, %1 : vector<8x256xf32>
    %c0_28 = arith.constant 0 : index
    %c0_29 = arith.constant 0 : index
    %c0_30 = arith.constant 0 : index
    %92 = vector.load %arg7[%c0_28, %c0_29, %c0_30] : memref<1x8x256xf32, #tpu.memory_space<vmem>>, vector<1x8x256xf32>
    %93 = vector.shape_cast %92 : vector<1x8x256xf32> to vector<8x256xf32>
    %94 = vector.shape_cast %91 : vector<8x256xf32> to vector<1x8x256xf32>
    tpu.vector_store %arg7[%c0_28, %c0_29, %c0_30], %94 {strides = array<i32>} : memref<1x8x256xf32, #tpu.memory_space<vmem>>, vector<1x8x256xf32>,
    return
  }
  func.func @transform_0(%arg0: i32) -> (i32, i32, i32) {
    %c0_i32 = arith.constant 0 : i32
    %c0_i32_0 = arith.constant 0 : i32
    %c0_i32_1 = arith.constant 0 : i32
    return %arg0, %c0_i32, %c0_i32_0 : i32, i32, i32
  }
  func.func @transform_1(%arg0: i32) -> (i32, i32) {
    %c0_i32 = arith.constant 0 : i32
    %c0_i32_0 = arith.constant 0 : i32
    %c0_i32_1 = arith.constant 0 : i32
    return %c0_i32, %c0_i32_0 : i32, i32
  }
  func.func @transform_2(%arg0: i32) -> (i32, i32) {
    %c0_i32 = arith.constant 0 : i32
    %c0_i32_0 = arith.constant 0 : i32
    %c0_i32_1 = arith.constant 0 : i32
    return %c0_i32, %c0_i32_0 : i32, i32
  }
  func.func @transform_3(%arg0: i32) -> (i32, i32) {
    %c0_i32 = arith.constant 0 : i32
    %c0_i32_0 = arith.constant 0 : i32
    %c0_i32_1 = arith.constant 0 : i32
    return %c0_i32, %c0_i32_0 : i32, i32
  }
  func.func @transform_4(%arg0: i32) -> (i32, i32) {
    %c0_i32 = arith.constant 0 : i32
    %c0_i32_0 = arith.constant 0 : i32
    %c0_i32_1 = arith.constant 0 : i32
    return %c0_i32, %c0_i32_0 : i32, i32
  }
  func.func @transform_5(%arg0: i32) -> (i32, i32) {
    %c0_i32 = arith.constant 0 : i32
    %c0_i32_0 = arith.constant 0 : i32
    %c0_i32_1 = arith.constant 0 : i32
    return %c0_i32, %c0_i32_0 : i32, i32
  }
  func.func @transform_6(%arg0: i32) -> (i32, i32, i32) {
    %c0_i32 = arith.constant 0 : i32
    %c0_i32_0 = arith.constant 0 : i32
    %c0_i32_1 = arith.constant 0 : i32
    return %arg0, %c0_i32, %c0_i32_0 : i32, i32, i32
  }
}

</mosaic_0001>

<llo_original>
// kernel: tpu_custom_call.1
$region0: #{tpu_custom_call.1}
  #allocation0 [shape = 'u32[]', space=smem, size = 0x4, offset = 0x4, fixed_abs, tag = 'smem constant byte address 0x4 - core index']
  #allocation1 [shape = 'u32[144,128]{1,0:T(1,128)}', space=vmem, size = 0x12000, scoped, tag = 'internal scratch']
  %s0 = inlined_call_operand.hbm [shape: f32[2,8,256], index: 0, kind: input, shape index: {}]
  %s1 = inlined_call_operand.vmem [shape: f32[8,72], index: 1, kind: input, shape index: {}]
  %s2 = inlined_call_operand.vmem [shape: f32[8,1], index: 2, kind: input, shape index: {}]
  %s3 = inlined_call_operand.vmem [shape: f32[8,72], index: 3, kind: input, shape index: {}]
  %s4 = inlined_call_operand.vmem [shape: f32[8,1], index: 4, kind: input, shape index: {}]
  %s5 = inlined_call_operand.vmem [shape: s32[1,256], index: 5, kind: input, shape index: {}]
  %s6 = inlined_call_operand.hbm [shape: f32[2,8,256], index: 6, kind: output, shape index: {}]
  %s7 = sld [smem:[#allocation0]]
  $region61: #{tpu_custom_call.1} parent=0
    _
  %s9 = ssub.s32 1, %s7
  %s10 = scalar_select 0, %s9, %s7
  $region1: #{tpu_custom_call.1} parent=0
    #allocation2 [shape = 'u8[16384]{0}', space=vmem, size = 0x4000, scoped, tag = 'input window, operand 0']
    #allocation3 [shape = 's32[2]{0}', space=sflag, size = 0x8, scoped, tag = 'scoped memory for tpu_custom_call.1']
    #allocation4 [shape = 's32[2]{0}', space=sflag, size = 0x8, scoped, tag = 'scoped memory for tpu_custom_call.1']
    #allocation5 [shape = 'u8[16384]{0}', space=vmem, size = 0x4000, scoped, tag = 'output window, operand 0']
    %11 = vsyncpa [#allocation3], 0
    %s12 = scalar_lea.sflag [#allocation3], 1
    %13 = vsyncpa %s12, 0
    %14 = vsyncpa [#allocation4], 0
    %s15 = scalar_lea.sflag [#allocation4], 1
    %16 = vsyncpa %s15, 0
    loop: start=0, step=1, limit=4
    $region2: #{tpu_custom_call.1} parent=1 // loop_pre_header
      _
    $region3: #{tpu_custom_call.1} parent=1 // loop_header
      %s18 = sphi 0, %s22
      %p19 = scmp.ge.s32.totalorder %s18, 4
      %s28 = sphi 0, %s30
      %s31 = sphi 0, %s28
      %s32 = sphi 0, %s31
      %s48 = sphi 0, %s32
      %s52 = sphi 0, %s52
      %s54 = sphi 0, %s52
      %s55 = sphi 0, %s54
      %s69 = sphi 0, %s55
      %s73 = sphi 0, %s73
      %s75 = sphi 0, %s73
      %s76 = sphi 0, %s75
      %s90 = sphi 0, %s76
      %s94 = sphi 0, %s94
      %s96 = sphi 0, %s94
      %s97 = sphi 0, %s96
      %s111 = sphi 0, %s97
      %s115 = sphi 0, %s115
      %s117 = sphi 0, %s115
      %s118 = sphi 0, %s117
      %s132 = sphi 0, %s118
      %s136 = sphi 0, %s136
      %s138 = sphi 0, %s136
      %s139 = sphi 0, %s138
      %s153 = sphi 0, %s139
      %s159 = sphi 0, %s161
      %s162 = sphi 0, %s159
      %s163 = sphi 0, %s162
      %s179 = sphi 0, %s163
    $region4: #{tpu_custom_call.1} parent=1 // loop_header_branch
      %21 = sbr.rel (%p19) target = $region8
    $region5: #{tpu_custom_call.1} parent=1 // loop_body
      %s23 = ssub.s32 %s18, 1
      %s24 = ssub.s32 %s18, 2
      %s25 = sadd.s32 %s18, 1
      %s26 = ssub.s32 %s18, %s25
      %p27 = scmp.eq.s32.totalorder %s26, 0
      %s29 = sadd.s32 %s28, 1
      %s30 = scalar_select %p27, %s28, %s29
      %p33 = pneg %p27
      %p34 = scmp.eq.s32.totalorder %s18, 1
      %p35 = por %p33, %p34
      %p36 = scmp.ne.s32.totalorder %s28, %s31
      %p37 = scmp.eq.s32.totalorder %s18, 0
      %p38 = por %p36, %p37
      %p39 = scmp.ne.s32.totalorder %s28, %s31
      %p40 = scmp.eq.s32.totalorder %s23, 1
      %p41 = por %p39, %p40
      %p42 = scmp.ne.s32.totalorder %s31, %s32
      %p43 = scmp.eq.s32.totalorder %s23, 0
      %p44 = por %p42, %p43
      %p45 = scmp.ne.s32.totalorder %s31, %s32
      %p46 = scmp.eq.s32.totalorder %s24, 1
      %p47 = por %p45, %p46
      %p49 = scmp.ne.s32.totalorder %s32, %s48
      %p50 = scmp.eq.s32.totalorder %s24, 0
      %p51 = por %p49, %p50
      %s53 = sadd.s32 %s52, 1
      %p56 = scmp.eq.s32.totalorder %s18, 1
      %p57 = scmp.ne.s32.totalorder %s52, %s54
      %p58 = scmp.eq.s32.totalorder %s18, 0
      %p59 = por %p57, %p58
      %p60 = scmp.ne.s32.totalorder %s52, %s54
      %p61 = scmp.eq.s32.totalorder %s23, 1
      %p62 = por %p60, %p61
      %p63 = scmp.ne.s32.totalorder %s54, %s55
      %p64 = scmp.eq.s32.totalorder %s23, 0
      %p65 = por %p63, %p64
      %p66 = scmp.ne.s32.totalorder %s54, %s55
      %p67 = scmp.eq.s32.totalorder %s24, 1
      %p68 = por %p66, %p67
      %p70 = scmp.ne.s32.totalorder %s55, %s69
      %p71 = scmp.eq.s32.totalorder %s24, 0
      %p72 = por %p70, %p71
      %s74 = sadd.s32 %s73, 1
      %p77 = scmp.eq.s32.totalorder %s18, 1
      %p78 = scmp.ne.s32.totalorder %s73, %s75
      %p79 = scmp.eq.s32.totalorder %s18, 0
      %p80 = por %p78, %p79
      %p81 = scmp.ne.s32.totalorder %s73, %s75
      %p82 = scmp.eq.s32.totalorder %s23, 1
      %p83 = por %p81, %p82
      %p84 = scmp.ne.s32.totalorder %s75, %s76
      %p85 = scmp.eq.s32.totalorder %s23, 0
      %p86 = por %p84, %p85
      %p87 = scmp.ne.s32.totalorder %s75, %s76
      %p88 = scmp.eq.s32.totalorder %s24, 1
      %p89 = por %p87, %p88
      %p91 = scmp.ne.s32.totalorder %s76, %s90
      %p92 = scmp.eq.s32.totalorder %s24, 0
      %p93 = por %p91, %p92
      %s95 = sadd.s32 %s94, 1
      %p98 = scmp.eq.s32.totalorder %s18, 1
      %p99 = scmp.ne.s32.totalorder %s94, %s96
      %p100 = scmp.eq.s32.totalorder %s18, 0
      %p101 = por %p99, %p100
      %p102 = scmp.ne.s32.totalorder %s94, %s96
      %p103 = scmp.eq.s32.totalorder %s23, 1
      %p104 = por %p102, %p103
      %p105 = scmp.ne.s32.totalorder %s96, %s97
      %p106 = scmp.eq.s32.totalorder %s23, 0
      %p107 = por %p105, %p106
      %p108 = scmp.ne.s32.totalorder %s96, %s97
      %p109 = scmp.eq.s32.totalorder %s24, 1
      %p110 = por %p108, %p109
      %p112 = scmp.ne.s32.totalorder %s97, %s111
      %p113 = scmp.eq.s32.totalorder %s24, 0
      %p114 = por %p112, %p113
      %s116 = sadd.s32 %s115, 1
      %p119 = scmp.eq.s32.totalorder %s18, 1
      %p120 = scmp.ne.s32.totalorder %s115, %s117
      %p121 = scmp.eq.s32.totalorder %s18, 0
      %p122 = por %p120, %p121
      %p123 = scmp.ne.s32.totalorder %s115, %s117
      %p124 = scmp.eq.s32.totalorder %s23, 1
      %p125 = por %p123, %p124
      %p126 = scmp.ne.s32.totalorder %s117, %s118
      %p127 = scmp.eq.s32.totalorder %s23, 0
      %p128 = por %p126, %p127
      %p129 = scmp.ne.s32.totalorder %s117, %s118
      %p130 = scmp.eq.s32.totalorder %s24, 1
      %p131 = por %p129, %p130
      %p133 = scmp.ne.s32.totalorder %s118, %s132
      %p134 = scmp.eq.s32.totalorder %s24, 0
      %p135 = por %p133, %p134
      %s137 = sadd.s32 %s136, 1
      %p140 = scmp.eq.s32.totalorder %s18, 1
      %p141 = scmp.ne.s32.totalorder %s136, %s138
      %p142 = scmp.eq.s32.totalorder %s18, 0
      %p143 = por %p141, %p142
      %p144 = scmp.ne.s32.totalorder %s136, %s138
      %p145 = scmp.eq.s32.totalorder %s23, 1
      %p146 = por %p144, %p145
      %p147 = scmp.ne.s32.totalorder %s138, %s139
      %p148 = scmp.eq.s32.totalorder %s23, 0
      %p149 = por %p147, %p148
      %p150 = scmp.ne.s32.totalorder %s138, %s139
      %p151 = scmp.eq.s32.totalorder %s24, 1
      %p152 = por %p150, %p151
      %p154 = scmp.ne.s32.totalorder %s139, %s153
      %p155 = scmp.eq.s32.totalorder %s24, 0
      %p156 = por %p154, %p155
      %s157 = ssub.s32 %s18, %s25
      %p158 = scmp.eq.s32.totalorder %s157, 0
      %s160 = sadd.s32 %s159, 1
      %s161 = scalar_select %p158, %s159, %s160
      %p164 = pneg %p158
      %p165 = scmp.eq.s32.totalorder %s18, 1
      %p166 = por %p164, %p165
      %p167 = scmp.ne.s32.totalorder %s159, %s162
      %p168 = scmp.eq.s32.totalorder %s18, 0
      %p169 = por %p167, %p168
      %p170 = scmp.ne.s32.totalorder %s159, %s162
      %p171 = scmp.eq.s32.totalorder %s23, 1
      %p172 = por %p170, %p171
      %p173 = scmp.ne.s32.totalorder %s162, %s163
      %p174 = scmp.eq.s32.totalorder %s23, 0
      %p175 = por %p173, %p174
      %p176 = scmp.ne.s32.totalorder %s162, %s163
      %p177 = scmp.eq.s32.totalorder %s24, 1
      %p178 = por %p176, %p177
      %p180 = scmp.ne.s32.totalorder %s163, %s179
      %p181 = scmp.eq.s32.totalorder %s24, 0
      %p182 = por %p180, %p181
      %p183 = scmp.le.s32.totalorder 1, %s18
      %p184 = scmp.lt.s32.totalorder %s18, 3
      %p185 = pnand %p183, %p184
      %p186 = pneg %p185
      // Predicated region
      $region9: #{tpu_custom_call.1} parent=5 // pred_check
        _
      $region10: #{tpu_custom_call.1} parent=5 // pred_check_branch
        %188 = sbr.rel (%p185) target = $region12
      $region11: #{tpu_custom_call.1} parent=5 // pred_region
        %s189 = ssub.s32 %s18, 1
        // Predicated region
        $region13: #{tpu_custom_call.1} parent=11 // pred_check
          %p190 = pneg %p65
        $region14: #{tpu_custom_call.1} parent=11 // pred_check_branch
          %192 = sbr.rel (%p190) target = $region16
        $region15: #{tpu_custom_call.1} parent=11 // pred_region
          _
        $region16: #{tpu_custom_call.1} parent=11 // pred_fallthru
          _
        // Predicated region
        $region17: #{tpu_custom_call.1} parent=11 // pred_check
          %p193 = pneg %p86
        $region18: #{tpu_custom_call.1} parent=11 // pred_check_branch
          %195 = sbr.rel (%p193) target = $region20
        $region19: #{tpu_custom_call.1} parent=11 // pred_region
          _
        $region20: #{tpu_custom_call.1} parent=11 // pred_fallthru
          _
        // Predicated region
        $region21: #{tpu_custom_call.1} parent=11 // pred_check
          %p196 = pneg %p107
        $region22: #{tpu_custom_call.1} parent=11 // pred_check_branch
          %198 = sbr.rel (%p196) target = $region24
        $region23: #{tpu_custom_call.1} parent=11 // pred_region
          _
        $region24: #{tpu_custom_call.1} parent=11 // pred_fallthru
          _
        // Predicated region
        $region25: #{tpu_custom_call.1} parent=11 // pred_check
          %p199 = pneg %p128
        $region26: #{tpu_custom_call.1} parent=11 // pred_check_branch
          %201 = sbr.rel (%p199) target = $region28
        $region27: #{tpu_custom_call.1} parent=11 // pred_region
          _
        $region28: #{tpu_custom_call.1} parent=11 // pred_fallthru
          _
        // Predicated region
        $region29: #{tpu_custom_call.1} parent=11 // pred_check
          %p202 = pneg %p149
        $region30: #{tpu_custom_call.1} parent=11 // pred_check_branch
          %204 = sbr.rel (%p202) target = $region32
        $region31: #{tpu_custom_call.1} parent=11 // pred_region
          _
        $region32: #{tpu_custom_call.1} parent=11 // pred_fallthru
          _
      $region12: #{tpu_custom_call.1} parent=5 // pred_fallthru
        _
      %p205 = scmp.lt.s32.totalorder %s18, 2
      // Predicated region
      $region33: #{tpu_custom_call.1} parent=5 // pred_check
        %p206 = pneg %p205
      $region34: #{tpu_custom_call.1} parent=5 // pred_check_branch
        %208 = sbr.rel (%p206) target = $region36
      $region35: #{tpu_custom_call.1} parent=5 // pred_region
        // Predicated region
        $region37: #{tpu_custom_call.1} parent=35 // pred_check
          %p209 = pneg %p38
        $region38: #{tpu_custom_call.1} parent=35 // pred_check_branch
          %211 = sbr.rel (%p209) target = $region40
        $region39: #{tpu_custom_call.1} parent=35 // pred_region
          %s212 = sand.u32 %s28, 1
          %s213 = scalar_lea.sflag [#allocation3], %s212
          %s214 = sand.u32 %s28, 1
          %s215 = smul.addr %s214, 16
          %s216 = scalar_lea.vmem [#allocation2], %s215
          %s218 = ssub.s32 256, 256
          %219 = vsyncadd %s213, %s218
          %s220 = smul.addr %s18, 2
          %s221 = smul.addr %s220, 128
          %s222 = scalar_lea.hbm %s0, %s221
          %s224 = sshll.u32 %s216, 4
          %s225 = int_to_ptr.vmem [resolvable:$true] %s224
          %227 = dma.hbm_to_vmem [thread:$0]  %s222, 256, %s225, %s213
        $region40: #{tpu_custom_call.1} parent=35 // pred_fallthru
          _
      $region36: #{tpu_custom_call.1} parent=5 // pred_fallthru
        _
      %p228 = scmp.le.s32.totalorder 1, %s18
      %p229 = scmp.lt.s32.totalorder %s18, 3
      %p230 = pnand %p228, %p229
      %p231 = pneg %p230
      // Predicated region
      $region41: #{tpu_custom_call.1} parent=5 // pred_check
        _
      $region42: #{tpu_custom_call.1} parent=5 // pred_check_branch
        %233 = sbr.rel (%p230) target = $region44
      $region43: #{tpu_custom_call.1} parent=5 // pred_region
        %s234 = ssub.s32 %s18, 1
        %s235 = sand.u32 %s31, 1
        %s236 = scalar_lea.sflag [#allocation3], %s235
        %s237 = sand.u32 %s31, 1
        %s238 = smul.addr %s237, 16
        %s239 = scalar_lea.vmem [#allocation2], %s238
        // Predicated region
        $region45: #{tpu_custom_call.1} parent=43 // pred_check
          %p240 = pneg %p44
        $region46: #{tpu_custom_call.1} parent=43 // pred_check_branch
          %242 = sbr.rel (%p240) target = $region48
        $region47: #{tpu_custom_call.1} parent=43 // pred_region
          %243 = dma.done %s236, 256
        $region48: #{tpu_custom_call.1} parent=43 // pred_fallthru
          _
        %s244 = sand.u32 %s31, 1
        %s245 = scalar_lea.sflag [#allocation3], %s244
        %s246 = sand.u32 %s31, 1
        %s247 = smul.addr %s246, 16
        %s248 = scalar_lea.vmem [#allocation2], %s247
        %p249 = pneg %p44
        %p250 = pneg %p41
        %p251 = pneg %p65
        %p252 = pneg %p62
        %p253 = pneg %p86
        %p254 = pneg %p83
        %p255 = pneg %p107
        %p256 = pneg %p104
        %p257 = pneg %p128
        %p258 = pneg %p125
        %p259 = pneg %p149
        %p260 = pneg %p146
        %p261 = pneg %p175
        %p262 = pneg %p172
        %s263 = sand.u32 %s162, 1
        %s264 = scalar_lea.sflag [#allocation4], %s263
        %s265 = sand.u32 %s162, 1
        %s266 = smul.addr %s265, 16
        %s267 = scalar_lea.vmem [#allocation5], %s266
        %v268 = vld [vmem:[%s239] sm:$0xff]
        %v269 = vld [vmem:[%s239 + $0x8] sm:$0xff]
        %v270 = vld [vmem:[%s5] sm:$0x3]
        %vm271 = vcmp.ge.s32.totalorder %v270, 1
        %vm272 = vcmp.le.s32.totalorder %v270, 14
        %v273 = vld [vmem:[%s1] sm:$0xff]
        %276 = vrot.lane.b32.xlu0 %v268, 17
        %v277 = vpop.permute.xlu0 %276
        %278 = vrot.lane.b32.xlu0 %v269, 17
        %v279 = vpop.permute.xlu0 %278
        %vm280 = vcmask 138240
        %v281 = vsel %vm280, %v277, %v279
        %v285 = vsel %vm280, 0.0, %v277
        %v286 = vsel %vm280, %v279, 0.0
        %v287 = vsel %vm271, 1, 0
        %v288 = vlaneseq
        %v289 = vshrl.u32 %v288, 7
        %v290 = vsub.s32 0, %v289
        %v291 = vrot.slane %v287, %v290
        %v292 = vlaneseq
        %v293 = vshrl.u32 %v292, 7
        %v294 = vsub.s32 1, %v293
        %v295 = vrot.slane %v287, %v294
        %vm296 = vcmp.eq.s32.totalorder %v291, 1
        %vm297 = vcmp.eq.s32.totalorder %v295, 1
        %v298 = vsel %vm296, %v285, 0.0
        %v299 = vsel %vm297, %v281, 0.0
        %v300 = vsel %vm272, 1, 0
        %v301 = vlaneseq
        %v302 = vshrl.u32 %v301, 7
        %v303 = vsub.s32 0, %v302
        %v304 = vrot.slane %v300, %v303
        %v305 = vlaneseq
        %v306 = vshrl.u32 %v305, 7
        %v307 = vsub.s32 1, %v306
        %v308 = vrot.slane %v300, %v307
        %vm309 = vcmp.eq.s32.totalorder %v304, 1
        %vm310 = vcmp.eq.s32.totalorder %v308, 1
        %313 = vrot.lane.b32.xlu0 %v285, 126
        %v314 = vpop.permute.xlu0 %313
        %315 = vrot.lane.b32.xlu0 %v281, 126
        %v316 = vpop.permute.xlu0 %315
        %317 = vrot.lane.b32.xlu0 %v286, 126
        %v318 = vpop.permute.xlu0 %317
        %vm319 = vcmask 1031168
        %v320 = vsel %vm319, %v314, %v316
        %v321 = vsel %vm319, %v316, %v318
        %v324 = vsel %vm309, %v320, 0.0
        %v325 = vsel %vm310, %v321, 0.0
        %326 = vrot.lane.b32.xlu0 %v285, 112
        %v327 = vpop.permute.xlu0 %326
        %328 = vrot.lane.b32.xlu0 %v281, 112
        %v329 = vpop.permute.xlu0 %328
        %330 = vrot.lane.b32.xlu0 %v286, 112
        %v331 = vpop.permute.xlu0 %330
        %vm332 = vcmask 916480
        %v333 = vsel %vm332, %v327, %v329
        %v334 = vsel %vm332, %v329, %v331
        %v337 = vsel %vm296, %v333, 0.0
        %v338 = vsel %vm297, %v334, 0.0
        %339 = vrot.lane.b32.xlu0 %v285, 110
        %v340 = vpop.permute.xlu0 %339
        %341 = vrot.lane.b32.xlu0 %v281, 110
        %v342 = vpop.permute.xlu0 %341
        %343 = vrot.lane.b32.xlu0 %v286, 110
        %v344 = vpop.permute.xlu0 %343
        %vm345 = vcmask 900096
        %v346 = vsel %vm345, %v340, %v342
        %v347 = vsel %vm345, %v342, %v344
        %v350 = vsel %vm309, %v346, 0.0
        %v351 = vsel %vm310, %v347, 0.0
        %352 = vrot.lane.b32.xlu0 %v285, 96
        %v353 = vpop.permute.xlu0 %352
        %354 = vrot.lane.b32.xlu0 %v281, 96
        %v355 = vpop.permute.xlu0 %354
        %356 = vrot.lane.b32.xlu0 %v286, 96
        %v357 = vpop.permute.xlu0 %356
        %vm358 = vcmask 785408
        %v359 = vsel %vm358, %v353, %v355
        %v360 = vsel %vm358, %v355, %v357
        %v363 = vsel %vm296, %v359, 0.0
        %v364 = vsel %vm297, %v360, 0.0
        %365 = vrot.lane.b32.xlu0 %v285, 94
        %v366 = vpop.permute.xlu0 %365
        %367 = vrot.lane.b32.xlu0 %v281, 94
        %v368 = vpop.permute.xlu0 %367
        %369 = vrot.lane.b32.xlu0 %v286, 94
        %v370 = vpop.permute.xlu0 %369
        %vm371 = vcmask 769024
        %v372 = vsel %vm371, %v366, %v368
        %v373 = vsel %vm371, %v368, %v370
        %v376 = vsel %vm309, %v372, 0.0
        %v377 = vsel %vm310, %v373, 0.0
        %378 = vrot.lane.b32.xlu0 %v285, 127
        %v379 = vpop.permute.xlu0 %378
        %380 = vrot.lane.b32.xlu0 %v281, 127
        %v381 = vpop.permute.xlu0 %380
        %382 = vrot.lane.b32.xlu0 %v286, 127
        %v383 = vpop.permute.xlu0 %382
        %vm384 = vcmask 1039360
        %v385 = vsel %vm384, %v379, %v381
        %v386 = vsel %vm384, %v381, %v383
        %389 = vrot.lane.b32.xlu0 %v285, 111
        %v390 = vpop.permute.xlu0 %389
        %391 = vrot.lane.b32.xlu0 %v281, 111
        %v392 = vpop.permute.xlu0 %391
        %393 = vrot.lane.b32.xlu0 %v286, 111
        %v394 = vpop.permute.xlu0 %393
        %vm395 = vcmask 908288
        %v396 = vsel %vm395, %v390, %v392
        %v397 = vsel %vm395, %v392, %v394
        %400 = vrot.lane.b32.xlu0 %v285, 95
        %v401 = vpop.permute.xlu0 %400
        %402 = vrot.lane.b32.xlu0 %v281, 95
        %v403 = vpop.permute.xlu0 %402
        %404 = vrot.lane.b32.xlu0 %v286, 95
        %v405 = vpop.permute.xlu0 %404
        %vm406 = vcmask 777216
        %v407 = vsel %vm406, %v401, %v403
        %v408 = vsel %vm406, %v403, %v405
        %v411 = vld [vmem:[%s2] sm:$0xff]
        %413 = vset.pattern.permute.xlu0 0
        %414 = vperm.xlu0 %413, %v411
        %v415 = vpop.permute.xlu0 %414
        %vm417 = vcmask 588800
        %v419 = vsel %vm417, %v273, 0
        %421 = vmatprep.subr.mxu0 0.0
        %422 = vmatpush1.msra.mxu0 0.0
        %423 = vmatprep.subr.mxu0 0.0
        %424 = vmatpush1.msra.mxu0 0.0
        %425 = vmatprep.subr.mxu0 0.0
        %426 = vmatpush1.msra.mxu0 0.0
        %427 = vmatprep.subr.mxu0 0.0
        %428 = vmatpush1.msra.mxu0 0.0
        %429 = vmatprep.subr.mxu0 0.0
        %430 = vmatpush1.msra.mxu0 0.0
        %431 = vmatprep.subr.mxu0 0.0
        %432 = vmatpush1.msra.mxu0 0.0
        %433 = vmatprep.subr.mxu0 0.0
        %434 = vmatpush1.msra.mxu0 0.0
        %435 = vmatprep.subr.mxu0 %v377
        %436 = vmatpush1.msra.mxu0 %v376
        %437 = vmatprep.subr.mxu0 %v408
        %438 = vmatpush1.msra.mxu0 %v407
        %439 = vmatprep.subr.mxu0 %v364
        %440 = vmatpush1.msra.mxu0 %v363
        %441 = vmatprep.subr.mxu0 %v351
        %442 = vmatpush1.msra.mxu0 %v350
        %443 = vmatprep.subr.mxu0 %v397
        %444 = vmatpush1.msra.mxu0 %v396
        %445 = vmatprep.subr.mxu0 %v338
        %446 = vmatpush1.msra.mxu0 %v337
        %447 = vmatprep.subr.mxu0 %v325
        %448 = vmatpush1.msra.mxu0 %v324
        %449 = vmatprep.subr.mxu0 %v386
        %450 = vmatpush1.msra.mxu0 %v385
        %451 = vmatprep.subr.mxu0 %v299
        %452 = vmatpush1.msra.mxu0 %v298
        %453 = vmatprep.subr.mxu0 0.0
        %454 = vmatpush2.msra.mxu0 0.0
        %455 = vmatprep.subr.mxu0 0.0
        %456 = vmatpush2.msra.mxu0 0.0
        %457 = vmatprep.subr.mxu0 0.0
        %458 = vmatpush2.msra.mxu0 0.0
        %459 = vmatprep.subr.mxu0 0.0
        %460 = vmatpush2.msra.mxu0 0.0
        %461 = vmatprep.subr.mxu0 0.0
        %462 = vmatpush2.msra.mxu0 0.0
        %463 = vmatprep.subr.mxu0 0.0
        %464 = vmatpush2.msra.mxu0 0.0
        %465 = vmatprep.subr.mxu0 0.0
        %466 = vmatpush2.msra.mxu0 0.0
        %467 = vmatprep.subr.mxu0 0.0
        %468 = vmatpush2.msra.mxu0 0.0
        %469 = vmatprep.subr.mxu0 0.0
        %470 = vmatpush2.msra.mxu0 0.0
        %471 = vmatprep.subr.mxu0 0.0
        %472 = vmatpush2.msra.mxu0 0.0
        %473 = vmatprep.subr.mxu0 0.0
        %474 = vmatpush2.msra.mxu0 0.0
        %475 = vmatprep.subr.mxu0 0.0
        %476 = vmatpush2.msra.mxu0 0.0
        %477 = vmatprep.subr.mxu0 0.0
        %478 = vmatpush2.msra.mxu0 0.0
        %479 = vmatprep.subr.mxu0 0.0
        %480 = vmatpush2.msra.mxu0 0.0
        %481 = vmatprep.subr.mxu0 0.0
        %482 = vmatpush2.msra.mxu0 0.0
        %483 = vmatprep.subr.mxu0 0.0
        %484 = vmatpush2.msra.mxu0 0.0
        %485 = vmatprep.mubr.f32.mxu0 0.0
        %486 = vmatmul.mubr.f32.gmra.mxu0 %v419
        %v487 = vpop.f32.mrf.mxu0
        %v488 = vadd.f32 %v415, %v487
        %v489 = vpop.f32.mrf.mxu0
        %v490 = vadd.f32 %v415, %v489
        %491 = vdwg.mxu0
        %v492 = vmax.f32 %v488, 0.0
        %v493 = vmax.f32 %v490, 0.0
        %v494 = vld [vmem:[%s3] sm:$0xff]
        %497 = vrot.lane.b32.xlu0 %v492, 17
        %v498 = vpop.permute.xlu0 %497
        %499 = vrot.lane.b32.xlu0 %v493, 17
        %v500 = vpop.permute.xlu0 %499
        %v501 = vsel %vm280, %v498, %v500
        %v505 = vsel %vm280, 0.0, %v498
        %v506 = vsel %vm280, %v500, 0.0
        %v507 = vsel %vm296, %v505, 0.0
        %v508 = vsel %vm297, %v501, 0.0
        %511 = vrot.lane.b32.xlu0 %v505, 126
        %v512 = vpop.permute.xlu0 %511
        %513 = vrot.lane.b32.xlu0 %v501, 126
        %v514 = vpop.permute.xlu0 %513
        %515 = vrot.lane.b32.xlu0 %v506, 126
        %v516 = vpop.permute.xlu0 %515
        %v517 = vsel %vm319, %v512, %v514
        %v518 = vsel %vm319, %v514, %v516
        %v521 = vsel %vm309, %v517, 0.0
        %v522 = vsel %vm310, %v518, 0.0
        %523 = vrot.lane.b32.xlu0 %v505, 112
        %v524 = vpop.permute.xlu0 %523
        %525 = vrot.lane.b32.xlu0 %v501, 112
        %v526 = vpop.permute.xlu0 %525
        %527 = vrot.lane.b32.xlu0 %v506, 112
        %v528 = vpop.permute.xlu0 %527
        %v529 = vsel %vm332, %v524, %v526
        %v530 = vsel %vm332, %v526, %v528
        %v533 = vsel %vm296, %v529, 0.0
        %v534 = vsel %vm297, %v530, 0.0
        %535 = vrot.lane.b32.xlu0 %v505, 110
        %v536 = vpop.permute.xlu0 %535
        %537 = vrot.lane.b32.xlu0 %v501, 110
        %v538 = vpop.permute.xlu0 %537
        %539 = vrot.lane.b32.xlu0 %v506, 110
        %v540 = vpop.permute.xlu0 %539
        %v541 = vsel %vm345, %v536, %v538
        %v542 = vsel %vm345, %v538, %v540
        %v545 = vsel %vm309, %v541, 0.0
        %v546 = vsel %vm310, %v542, 0.0
        %547 = vrot.lane.b32.xlu0 %v505, 96
        %v548 = vpop.permute.xlu0 %547
        %549 = vrot.lane.b32.xlu0 %v501, 96
        %v550 = vpop.permute.xlu0 %549
        %551 = vrot.lane.b32.xlu0 %v506, 96
        %v552 = vpop.permute.xlu0 %551
        %v553 = vsel %vm358, %v548, %v550
        %v554 = vsel %vm358, %v550, %v552
        %v557 = vsel %vm296, %v553, 0.0
        %v558 = vsel %vm297, %v554, 0.0
        %559 = vrot.lane.b32.xlu0 %v505, 94
        %v560 = vpop.permute.xlu0 %559
        %561 = vrot.lane.b32.xlu0 %v501, 94
        %v562 = vpop.permute.xlu0 %561
        %563 = vrot.lane.b32.xlu0 %v506, 94
        %v564 = vpop.permute.xlu0 %563
        %v565 = vsel %vm371, %v560, %v562
        %v566 = vsel %vm371, %v562, %v564
        %v569 = vsel %vm309, %v565, 0.0
        %v570 = vsel %vm310, %v566, 0.0
        %571 = vrot.lane.b32.xlu0 %v505, 127
        %v572 = vpop.permute.xlu0 %571
        %573 = vrot.lane.b32.xlu0 %v501, 127
        %v574 = vpop.permute.xlu0 %573
        %575 = vrot.lane.b32.xlu0 %v506, 127
        %v576 = vpop.permute.xlu0 %575
        %v577 = vsel %vm384, %v572, %v574
        %v578 = vsel %vm384, %v574, %v576
        %581 = vrot.lane.b32.xlu0 %v505, 111
        %v582 = vpop.permute.xlu0 %581
        %583 = vrot.lane.b32.xlu0 %v501, 111
        %v584 = vpop.permute.xlu0 %583
        %585 = vrot.lane.b32.xlu0 %v506, 111
        %v586 = vpop.permute.xlu0 %585
        %v587 = vsel %vm395, %v582, %v584
        %v588 = vsel %vm395, %v584, %v586
        %591 = vrot.lane.b32.xlu0 %v505, 95
        %v592 = vpop.permute.xlu0 %591
        %593 = vrot.lane.b32.xlu0 %v501, 95
        %v594 = vpop.permute.xlu0 %593
        %595 = vrot.lane.b32.xlu0 %v506, 95
        %v596 = vpop.permute.xlu0 %595
        %v597 = vsel %vm406, %v592, %v594
        %v598 = vsel %vm406, %v594, %v596
        %v601 = vld [vmem:[%s4] sm:$0xff]
        %603 = vset.pattern.permute.xlu0 0
        %604 = vperm.xlu0 %603, %v601
        %v605 = vpop.permute.xlu0 %604
        %v608 = vsel %vm417, %v494, 0
        %610 = vmatprep.subr.mxu0 0.0
        %611 = vmatpush1.msra.mxu0 0.0
        %612 = vmatprep.subr.mxu0 0.0
        %613 = vmatpush1.msra.mxu0 0.0
        %614 = vmatprep.subr.mxu0 0.0
        %615 = vmatpush1.msra.mxu0 0.0
        %616 = vmatprep.subr.mxu0 0.0
        %617 = vmatpush1.msra.mxu0 0.0
        %618 = vmatprep.subr.mxu0 0.0
        %619 = vmatpush1.msra.mxu0 0.0
        %620 = vmatprep.subr.mxu0 0.0
        %621 = vmatpush1.msra.mxu0 0.0
        %622 = vmatprep.subr.mxu0 0.0
        %623 = vmatpush1.msra.mxu0 0.0
        %624 = vmatprep.subr.mxu0 %v570
        %625 = vmatpush1.msra.mxu0 %v569
        %626 = vmatprep.subr.mxu0 %v598
        %627 = vmatpush1.msra.mxu0 %v597
        %628 = vmatprep.subr.mxu0 %v558
        %629 = vmatpush1.msra.mxu0 %v557
        %630 = vmatprep.subr.mxu0 %v546
        %631 = vmatpush1.msra.mxu0 %v545
        %632 = vmatprep.subr.mxu0 %v588
        %633 = vmatpush1.msra.mxu0 %v587
        %634 = vmatprep.subr.mxu0 %v534
        %635 = vmatpush1.msra.mxu0 %v533
        %636 = vmatprep.subr.mxu0 %v522
        %637 = vmatpush1.msra.mxu0 %v521
        %638 = vmatprep.subr.mxu0 %v578
        %639 = vmatpush1.msra.mxu0 %v577
        %640 = vmatprep.subr.mxu0 %v508
        %641 = vmatpush1.msra.mxu0 %v507
        %642 = vmatprep.subr.mxu0 0.0
        %643 = vmatpush2.msra.mxu0 0.0
        %644 = vmatprep.subr.mxu0 0.0
        %645 = vmatpush2.msra.mxu0 0.0
        %646 = vmatprep.subr.mxu0 0.0
        %647 = vmatpush2.msra.mxu0 0.0
        %648 = vmatprep.subr.mxu0 0.0
        %649 = vmatpush2.msra.mxu0 0.0
        %650 = vmatprep.subr.mxu0 0.0
        %651 = vmatpush2.msra.mxu0 0.0
        %652 = vmatprep.subr.mxu0 0.0
        %653 = vmatpush2.msra.mxu0 0.0
        %654 = vmatprep.subr.mxu0 0.0
        %655 = vmatpush2.msra.mxu0 0.0
        %656 = vmatprep.subr.mxu0 0.0
        %657 = vmatpush2.msra.mxu0 0.0
        %658 = vmatprep.subr.mxu0 0.0
        %659 = vmatpush2.msra.mxu0 0.0
        %660 = vmatprep.subr.mxu0 0.0
        %661 = vmatpush2.msra.mxu0 0.0
        %662 = vmatprep.subr.mxu0 0.0
        %663 = vmatpush2.msra.mxu0 0.0
        %664 = vmatprep.subr.mxu0 0.0
        %665 = vmatpush2.msra.mxu0 0.0
        %666 = vmatprep.subr.mxu0 0.0
        %667 = vmatpush2.msra.mxu0 0.0
        %668 = vmatprep.subr.mxu0 0.0
        %669 = vmatpush2.msra.mxu0 0.0
        %670 = vmatprep.subr.mxu0 0.0
        %671 = vmatpush2.msra.mxu0 0.0
        %672 = vmatprep.subr.mxu0 0.0
        %673 = vmatpush2.msra.mxu0 0.0
        %674 = vmatprep.mubr.f32.mxu0 0.0
        %675 = vmatmul.mubr.f32.gmra.mxu0 %v608
        %v676 = vpop.f32.mrf.mxu0
        %v677 = vadd.f32 %v605, %v676
        %v678 = vpop.f32.mrf.mxu0
        %v679 = vadd.f32 %v605, %v678
        %680 = vdwg.mxu0
        %v681 = vadd.f32 %v677, %v268
        %v682 = vadd.f32 %v679, %v269
        %683 = vst [vmem:[%s267] sm:$0xff] %v681
        %684 = vst [vmem:[%s267 + $0x8] sm:$0xff] %v682
        %s685 = sand.u32 %s162, 1
        %s686 = scalar_lea.sflag [#allocation4], %s685
        %s687 = sand.u32 %s162, 1
        %s688 = smul.addr %s687, 16
        %s689 = scalar_lea.vmem [#allocation5], %s688
        // Predicated region
        $region49: #{tpu_custom_call.1} parent=43 // pred_check
          %p690 = pneg %p172
        $region50: #{tpu_custom_call.1} parent=43 // pred_check_branch
          %692 = sbr.rel (%p690) target = $region52
        $region51: #{tpu_custom_call.1} parent=43 // pred_region
          %s694 = ssub.s32 256, 256
          %695 = vsyncadd %s686, %s694
          %s696 = smul.addr %s23, 2
          %s697 = smul.addr %s696, 128
          %s698 = scalar_lea.hbm %s6, %s697
          %s700 = sshll.u32 %s689, 4
          %s701 = int_to_ptr.vmem [resolvable:$true] %s700
          %703 = dma.vmem_to_hbm [thread:$0]  %s701, 256, %s698, %s686
        $region52: #{tpu_custom_call.1} parent=43 // pred_fallthru
          _
      $region44: #{tpu_custom_call.1} parent=5 // pred_fallthru
        _
      %p704 = scmp.le.s32.totalorder 2, %s18
      // Predicated region
      $region53: #{tpu_custom_call.1} parent=5 // pred_check
        %p705 = pneg %p704
      $region54: #{tpu_custom_call.1} parent=5 // pred_check_branch
        %707 = sbr.rel (%p705) target = $region56
      $region55: #{tpu_custom_call.1} parent=5 // pred_region
        %s708 = ssub.s32 %s18, 2
        // Predicated region
        $region57: #{tpu_custom_call.1} parent=55 // pred_check
          %p709 = pneg %p178
        $region58: #{tpu_custom_call.1} parent=55 // pred_check_branch
          %711 = sbr.rel (%p709) target = $region60
        $region59: #{tpu_custom_call.1} parent=55 // pred_region
          %s712 = sand.u32 %s163, 1
          %s713 = scalar_lea.sflag [#allocation4], %s712
          %s714 = sand.u32 %s163, 1
          %s715 = smul.addr %s714, 16
          %s716 = scalar_lea.vmem [#allocation5], %s715
          %717 = dma.done %s713, 256
        $region60: #{tpu_custom_call.1} parent=55 // pred_fallthru
          _
      $region56: #{tpu_custom_call.1} parent=5 // pred_fallthru
        _
    $region6: #{tpu_custom_call.1} parent=1 // loop_footer
      %s22 = sadd.s32 1, %s18
    $region7: #{tpu_custom_call.1} parent=1 // loop_footer_branch
      %17 = sbr.rel target = $region3
    $region8: #{tpu_custom_call.1} parent=1 // loop_exit
      _
    %718 = vsyncpa [#allocation3], 1
    %s719 = scalar_lea.sflag [#allocation3], 1
    %720 = vsyncpa %s719, 1
    %721 = vsyncpa [#allocation4], 1
    %s722 = scalar_lea.sflag [#allocation4], 1
    %723 = vsyncpa %s722, 1

</llo_original>
